<compile_context>
chip_gen: v6e
topology: v6e:2x2x1
jax: 0.10.0
libtpu: 0.0.40
codegen_flags: <defaults>
</compile_context>

<pallas_src>
import functools

import jax
import jax.numpy as jnp
from jax.experimental import pallas as pl
from jax.experimental.pallas import tpu as pltpu


def _round_up(x, m):
    return ((x + m - 1) // m) * m


# ----------------------------------------------------------------------------
# Kernel: one batch tile of the FM interaction (gather fused via one-hot MXU).
# ----------------------------------------------------------------------------
def fm_kernel(conts_ref, cates_ref, table_ref, out_ref, *, cont_field, vocab):
    conts = conts_ref[...].astype(jnp.float32)    # (bb, Fc)
    cates = cates_ref[...]                        # (bb, Fcate) int32
    table = table_ref[...].astype(jnp.float32)    # (V, D) -- grid-invariant, VMEM resident

    bb = conts.shape[0]
    fcate = cates.shape[1]

    base = table[:cont_field, :]                  # rows 0..Fc-1 (cont-field embeddings)
    table_sq = table * table
    base_sq = table_sq[:cont_field, :]

    # One-hot field-count matrix for the categorical gather: (bb, V) f32.
    # counts[b, v] = number of categorical fields of row b with index v.
    col_ids = jax.lax.broadcasted_iota(jnp.int32, (bb, vocab), 1)
    counts = jnp.zeros((bb, vocab), jnp.float32)
    for f in range(fcate):                        # Fcate is small & static (unrolled)
        counts = counts + (cates[:, f:f + 1] == col_ids).astype(jnp.float32)

    # sum over all fields of x and of x^2, each as MXU matmuls (f32 acc).
    field_sum = (jnp.dot(conts, base, preferred_element_type=jnp.float32)
                 + jnp.dot(counts, table, preferred_element_type=jnp.float32))
    sum_sq = (jnp.dot(conts * conts, base_sq, preferred_element_type=jnp.float32)
              + jnp.dot(counts, table_sq, preferred_element_type=jnp.float32))

    # Folded FM reduction: x_fm = 0.5 * (sum_D field_sum^2 - sum_{field,D} x^2).
    square_of_sum = jnp.sum(field_sum * field_sum, axis=1)    # (bb,)
    sum_of_square = jnp.sum(sum_sq, axis=1)                   # (bb,)
    x_fm = 0.5 * (square_of_sum - sum_of_square)

    # Lane-dense (1, bb) store.
    out_ref[...] = jax.nn.sigmoid(x_fm)[None, :]


# ----------------------------------------------------------------------------
# Wrapper
# ----------------------------------------------------------------------------
def fm_forward(conts, cates, emb_table, combs=None, *, batch_block=2048):
    """conts: (B, Fc) f32, cates: (B, Fcate) int32, emb_table: (V, D) f32.

    `combs` is accepted for signature parity with the PyTorch module but is
    unused by its forward pass.
    """
    del combs
    B, Fc = conts.shape
    _, Fcate = cates.shape
    V, D = emb_table.shape

    conts = conts.astype(jnp.float32)
    cates = cates.astype(jnp.int32)
    emb_table = emb_table.astype(jnp.float32)

    # Batch-tile selection:
    #   * large B: batch_block rows per tile (overhead amortized, lane-dense out)
    #   * medium B: split into ~2 tiles (keeps both v7x TensorCores busy)
    #   * tiny B: a single padded tile
    if B >= 2 * batch_block:
        assert batch_block % 128 == 0, "batch_block must be a multiple of 128"
        bb = batch_block
    elif B >= 256:
        bb = _round_up(pl.cdiv(B, 2), 128)
    else:
        bb = _round_up(B, 8)
    B_pad = _round_up(B, bb)
    if B_pad != B:
        # Pad the cheap raw inputs (16 + 24 B/row), never a materialized
        # embedding array.
        conts = jnp.pad(conts, ((0, B_pad - B), (0, 0)))
        cates = jnp.pad(cates, ((0, B_pad - B), (0, 0)))

    grid = (B_pad // bb,)
    kernel = functools.partial(fm_kernel, cont_field=Fc, vocab=V)

    cost = pl.CostEstimate(
        flops=4 * B_pad * (V + Fc) * D,           # 4 MXU matmuls per row
        transcendentals=B_pad,                    # sigmoid
        bytes_accessed=(conts.size + cates.size + emb_table.size) * 4 + B_pad * 4,
    )

    out = pl.pallas_call(
        kernel,
        out_shape=jax.ShapeDtypeStruct((1, B_pad), jnp.float32),
        grid_spec=pltpu.PrefetchScalarGridSpec(
            num_scalar_prefetch=0,
            grid=grid,
            in_specs=[
                pl.BlockSpec((bb, Fc), lambda i: (i, 0)),       # cont features tile
                pl.BlockSpec((bb, Fcate), lambda i: (i, 0)),    # cate indices tile
                pl.BlockSpec((V, D), lambda i: (0, 0)),         # embedding table (resident)
            ],
            out_specs=pl.BlockSpec((1, bb), lambda i: (0, i)),  # lane-dense output
        ),
        compiler_params=pltpu.CompilerParams(
            dimension_semantics=("parallel",)),
        cost_estimate=cost,
    )(conts, cates, emb_table)

    return out[0, :B].reshape(B, 1)


# Pure-JAX reference (mirrors the PyTorch forward exactly).
def fm_reference(conts, cates, emb_table):
    B, Fc = conts.shape
    base_emb = emb_table[:Fc, :]                               # (Fc, D)
    cont_emb = base_emb[None, :, :] * conts[:, :, None]        # (B, Fc, D)
    cate_emb = emb_table[cates]                                # (B, Fcate, D)
    x = jnp.concatenate([cont_emb, cate_emb], axis=1)          # (B, F, D)
    square_of_sum = jnp.sum(x, axis=1) ** 2
    sum_of_square = jnp.sum(x ** 2, axis=1)
    ix = 0.5 * (square_of_sum - sum_of_square)
    x_fm = jnp.sum(ix, axis=1, keepdims=True)
    return jax.nn.sigmoid(x_fm)


if __name__ == "__main__":
    # Small, forward-consistent shapes.
    B = 16                 # batch
    CONT_FIELD = 4         # number of continuous fields
    CATE_FIELD = 6         # number of categorical fields
    VOCAB = 64             # cate_cont_feature (embedding rows)
    D = 40                 # orig_embedding_dim

    key = jax.random.PRNGKey(0)
    k_tab, k_conts, k_cates = jax.random.split(key, 3)

    # Deterministic parameter init matching nn.init.uniform_(-a, a),
    # a = (3 / (cate_field * orig_embedding_dim)) ** 2  (as written in the spec)
    a = (3.0 / (CATE_FIELD * D)) ** 2
    emb_table = jax.random.uniform(
        k_tab, (VOCAB, D), dtype=jnp.float32, minval=-a, maxval=a)

    conts = jax.random.normal(k_conts, (B, CONT_FIELD), dtype=jnp.float32)
    cates = jax.random.randint(k_cates, (B, CATE_FIELD), 0, VOCAB, dtype=jnp.int32)

    logit = fm_forward(conts, cates, emb_table)
    logit = jax.block_until_ready(logit)

    ref = fm_reference(conts, cates, emb_table)
    assert logit.shape == (B, 1)
    assert jnp.allclose(logit, ref, atol=1e-6, rtol=1e-5)

    print("KERNEL_OK")
</pallas_src>

<mosaic_0001>
module attributes {stable_mosaic.version = 11 : i64} {
  func.func @fm_kernel(%arg0: i32, %arg1: memref<16x4xf32, #tpu.memory_space<vmem>>, %arg2: memref<16x6xi32, #tpu.memory_space<vmem>>, %arg3: memref<64x40xf32, #tpu.memory_space<vmem>>, %arg4: memref<1x16xf32, #tpu.memory_space<vmem>>) attributes {dimension_semantics = [#tpu.dimension_semantics<parallel>], iteration_bounds = array<i64: 1>, scalar_prefetch = 0 : i64, scratch_operands = 0 : i64, tpu.core_type = #tpu.core_type<tc>, window_params = [{transform_indices = @transform_0, window_bounds = array<i64: 16, 4>}, {transform_indices = @transform_1, window_bounds = array<i64: 16, 6>}, {pipeline_mode = #tpu.pipeline_mode<synchronous>, transform_indices = @transform_2, window_bounds = array<i64: 64, 40>}, {transform_indices = @transform_3, window_bounds = array<i64: 1, 16>}]} {
    %c0 = arith.constant 0 : index
    %c0_0 = arith.constant 0 : index
    %0 = vector.load %arg1[%c0, %c0_0] : memref<16x4xf32, #tpu.memory_space<vmem>>, vector<16x4xf32>
    %c0_1 = arith.constant 0 : index
    %c0_2 = arith.constant 0 : index
    %1 = vector.load %arg2[%c0_1, %c0_2] : memref<16x6xi32, #tpu.memory_space<vmem>>, vector<16x6xi32>
    %c0_3 = arith.constant 0 : index
    %c0_4 = arith.constant 0 : index
    %2 = vector.load %arg3[%c0_3, %c0_4] : memref<64x40xf32, #tpu.memory_space<vmem>>, vector<64x40xf32>
    %3 = vector.extract_strided_slice %2 {offsets = [0, 0], sizes = [4, 40], strides = [1, 1]} : vector<64x40xf32> to vector<4x40xf32>
    %4 = arith.mulf %2, %2 : vector<64x40xf32>
    %5 = vector.extract_strided_slice %4 {offsets = [0, 0], sizes = [4, 40], strides = [1, 1]} : vector<64x40xf32> to vector<4x40xf32>
    %6 = tpu.iota {dimensions = array<i32: 1>} : vector<16x64xi32>
    %cst = arith.constant 0.000000e+00 : f32
    %7 = vector.broadcast %cst : f32 to vector<16x64xf32>
    %8 = vector.extract_strided_slice %1 {offsets = [0, 0], sizes = [16, 1], strides = [1, 1]} : vector<16x6xi32> to vector<16x1xi32>
    %9 = vector.broadcast %8 : vector<16x1xi32> to vector<16x64xi32>
    %10 = arith.cmpi eq, %9, %6 : vector<16x64xi32>
    %11 = arith.extui %10 : vector<16x64xi1> to vector<16x64xi32>
    %12 = arith.sitofp %11 : vector<16x64xi32> to vector<16x64xf32>
    %13 = arith.addf %7, %12 : vector<16x64xf32>
    %14 = vector.extract_strided_slice %1 {offsets = [0, 1], sizes = [16, 1], strides = [1, 1]} : vector<16x6xi32> to vector<16x1xi32>
    %15 = vector.broadcast %14 : vector<16x1xi32> to vector<16x64xi32>
    %16 = arith.cmpi eq, %15, %6 : vector<16x64xi32>
    %17 = arith.extui %16 : vector<16x64xi1> to vector<16x64xi32>
    %18 = arith.sitofp %17 : vector<16x64xi32> to vector<16x64xf32>
    %19 = arith.addf %13, %18 : vector<16x64xf32>
    %20 = vector.extract_strided_slice %1 {offsets = [0, 2], sizes = [16, 1], strides = [1, 1]} : vector<16x6xi32> to vector<16x1xi32>
    %21 = vector.broadcast %20 : vector<16x1xi32> to vector<16x64xi32>
    %22 = arith.cmpi eq, %21, %6 : vector<16x64xi32>
    %23 = arith.extui %22 : vector<16x64xi1> to vector<16x64xi32>
    %24 = arith.sitofp %23 : vector<16x64xi32> to vector<16x64xf32>
    %25 = arith.addf %19, %24 : vector<16x64xf32>
    %26 = vector.extract_strided_slice %1 {offsets = [0, 3], sizes = [16, 1], strides = [1, 1]} : vector<16x6xi32> to vector<16x1xi32>
    %27 = vector.broadcast %26 : vector<16x1xi32> to vector<16x64xi32>
    %28 = arith.cmpi eq, %27, %6 : vector<16x64xi32>
    %29 = arith.extui %28 : vector<16x64xi1> to vector<16x64xi32>
    %30 = arith.sitofp %29 : vector<16x64xi32> to vector<16x64xf32>
    %31 = arith.addf %25, %30 : vector<16x64xf32>
    %32 = vector.extract_strided_slice %1 {offsets = [0, 4], sizes = [16, 1], strides = [1, 1]} : vector<16x6xi32> to vector<16x1xi32>
    %33 = vector.broadcast %32 : vector<16x1xi32> to vector<16x64xi32>
    %34 = arith.cmpi eq, %33, %6 : vector<16x64xi32>
    %35 = arith.extui %34 : vector<16x64xi1> to vector<16x64xi32>
    %36 = arith.sitofp %35 : vector<16x64xi32> to vector<16x64xf32>
    %37 = arith.addf %31, %36 : vector<16x64xf32>
    %38 = vector.extract_strided_slice %1 {offsets = [0, 5], sizes = [16, 1], strides = [1, 1]} : vector<16x6xi32> to vector<16x1xi32>
    %39 = vector.broadcast %38 : vector<16x1xi32> to vector<16x64xi32>
    %40 = arith.cmpi eq, %39, %6 : vector<16x64xi32>
    %41 = arith.extui %40 : vector<16x64xi1> to vector<16x64xi32>
    %42 = arith.sitofp %41 : vector<16x64xi32> to vector<16x64xf32>
    %43 = arith.addf %37, %42 : vector<16x64xf32>
    %cst_5 = arith.constant dense<0.000000e+00> : vector<16x40xf32>
    %44 = tpu.matmul %0, %3, %cst_5 {dimension_numbers = #tpu.dot_dimension_numbers<[1], [0], [0], [1], [0, 0, 1, 1], [], []>} : vector<16x4xf32>, vector<4x40xf32>, vector<16x40xf32> -> vector<16x40xf32>
    %cst_6 = arith.constant dense<0.000000e+00> : vector<16x40xf32>
    %45 = tpu.matmul %43, %2, %cst_6 {dimension_numbers = #tpu.dot_dimension_numbers<[1], [0], [0], [1], [0, 0, 1, 1], [], []>} : vector<16x64xf32>, vector<64x40xf32>, vector<16x40xf32> -> vector<16x40xf32>
    %46 = arith.addf %44, %45 : vector<16x40xf32>
    %47 = arith.mulf %0, %0 : vector<16x4xf32>
    %cst_7 = arith.constant dense<0.000000e+00> : vector<16x40xf32>
    %48 = tpu.matmul %47, %5, %cst_7 {dimension_numbers = #tpu.dot_dimension_numbers<[1], [0], [0], [1], [0, 0, 1, 1], [], []>} : vector<16x4xf32>, vector<4x40xf32>, vector<16x40xf32> -> vector<16x40xf32>
    %cst_8 = arith.constant dense<0.000000e+00> : vector<16x40xf32>
    %49 = tpu.matmul %43, %4, %cst_8 {dimension_numbers = #tpu.dot_dimension_numbers<[1], [0], [0], [1], [0, 0, 1, 1], [], []>} : vector<16x64xf32>, vector<64x40xf32>, vector<16x40xf32> -> vector<16x40xf32>
    %50 = arith.addf %48, %49 : vector<16x40xf32>
    %51 = arith.mulf %46, %46 : vector<16x40xf32>
    %cst_9 = arith.constant dense<0.000000e+00> : vector<16xf32>
    %52 = vector.multi_reduction <add>, %51, %cst_9 [1] : vector<16x40xf32> to vector<16xf32>
    %cst_10 = arith.constant dense<0.000000e+00> : vector<16xf32>
    %53 = vector.multi_reduction <add>, %50, %cst_10 [1] : vector<16x40xf32> to vector<16xf32>
    %54 = arith.subf %52, %53 : vector<16xf32>
    %cst_11 = arith.constant 5.000000e-01 : f32
    %55 = vector.broadcast %cst_11 : f32 to vector<16xf32>
    %56 = arith.mulf %55, %54 : vector<16xf32>
    %57 = arith.negf %56 : vector<16xf32>
    %58 = math.exp %57 : vector<16xf32>
    %cst_12 = arith.constant 1.000000e+00 : f32
    %59 = vector.broadcast %cst_12 : f32 to vector<16xf32>
    %60 = arith.addf %59, %58 : vector<16xf32>
    %61 = arith.divf %59, %60 : vector<16xf32>
    %62 = vector.shape_cast %61 : vector<16xf32> to vector<1x16xf32>
    %c0_13 = arith.constant 0 : index
    %c0_14 = arith.constant 0 : index
    %63 = vector.load %arg4[%c0_13, %c0_14] : memref<1x16xf32, #tpu.memory_space<vmem>>, vector<1x16xf32>
    tpu.vector_store %arg4[%c0_13, %c0_14], %62 {strides = array<i32>} : memref<1x16xf32, #tpu.memory_space<vmem>>, vector<1x16xf32>,
    return
  }
  func.func @transform_0(%arg0: i32) -> (i32, i32) {
    %c0_i32 = arith.constant 0 : i32
    %c0_i32_0 = arith.constant 0 : i32
    return %arg0, %c0_i32 : i32, i32
  }
  func.func @transform_1(%arg0: i32) -> (i32, i32) {
    %c0_i32 = arith.constant 0 : i32
    %c0_i32_0 = arith.constant 0 : i32
    return %arg0, %c0_i32 : i32, i32
  }
  func.func @transform_2(%arg0: i32) -> (i32, i32) {
    %c0_i32 = arith.constant 0 : i32
    %c0_i32_0 = arith.constant 0 : i32
    %c0_i32_1 = arith.constant 0 : i32
    return %c0_i32, %c0_i32_0 : i32, i32
  }
  func.func @transform_3(%arg0: i32) -> (i32, i32) {
    %c0_i32 = arith.constant 0 : i32
    %c0_i32_0 = arith.constant 0 : i32
    return %c0_i32, %arg0 : i32, i32
  }
}

</mosaic_0001>

<llo_original>
// kernel: tpu_custom_call.1
$region0: #{tpu_custom_call.1}
  #allocation0 [shape = 'u32[]', space=smem, size = 0x4, offset = 0x4, fixed_abs, tag = 'smem constant byte address 0x4 - core index']
  #allocation1 [shape = 'u32[144,128]{1,0:T(1,128)}', space=vmem, size = 0x12000, scoped, tag = 'internal scratch']
  %s0 = inlined_call_operand.vmem [shape: f32[16,4], index: 0, kind: input, shape index: {}]
  %s1 = inlined_call_operand.vmem [shape: s32[16,6], index: 1, kind: input, shape index: {}]
  %s2 = inlined_call_operand.vmem [shape: f32[64,40], index: 2, kind: input, shape index: {}]
  %s3 = inlined_call_operand.hbm [shape: f32[1,16], index: 3, kind: output, shape index: {}]
  %s4 = sld [smem:[#allocation0]]
  $region22: #{tpu_custom_call.1} parent=0
    _
  %s6 = ssub.s32 1, %s4
  %s7 = scalar_select 0, %s6, %s4
  $region1: #{tpu_custom_call.1} parent=0
    #allocation2 [shape = 'u8[512]{0}', space=vmem, size = 0x400, scoped, tag = 'output window, operand 0, single buffered']
    #allocation3 [shape = 's32[1]{0}', space=sflag, size = 0x4, scoped, tag = 'scoped memory for tpu_custom_call.1']
    %8 = vsyncpa [#allocation3], 0
    // Predicated region
    $region2: #{tpu_custom_call.1} parent=1 // pred_check
      _
    $region3: #{tpu_custom_call.1} parent=1 // pred_check_branch
      %10 = sbr.rel (0) target = $region5
    $region4: #{tpu_custom_call.1} parent=1 // pred_region
      _
    $region5: #{tpu_custom_call.1} parent=1 // pred_fallthru
      _
    // Predicated region
    $region6: #{tpu_custom_call.1} parent=1 // pred_check
      _
    $region7: #{tpu_custom_call.1} parent=1 // pred_check_branch
      %12 = sbr.rel (0) target = $region9
    $region8: #{tpu_custom_call.1} parent=1 // pred_region
      _
    $region9: #{tpu_custom_call.1} parent=1 // pred_fallthru
      _
    // Predicated region
    $region10: #{tpu_custom_call.1} parent=1 // pred_check
      _
    $region11: #{tpu_custom_call.1} parent=1 // pred_check_branch
      %14 = sbr.rel (0) target = $region13
    $region12: #{tpu_custom_call.1} parent=1 // pred_region
      _
    $region13: #{tpu_custom_call.1} parent=1 // pred_fallthru
      _
    %v15 = vld [vmem:[%s0] sm:$0xff]
    %v16 = vld [vmem:[%s0 + $0x8] sm:$0xff]
    %v17 = vld [vmem:[%s1] sm:$0xff]
    %v18 = vld [vmem:[%s1 + $0x8] sm:$0xff]
    %v19 = vld [vmem:[%s2] sm:$0xff]
    %v20 = vld [vmem:[%s2 + $0x8] sm:$0xff]
    %v21 = vld [vmem:[%s2 + $0x10] sm:$0xff]
    %v22 = vld [vmem:[%s2 + $0x18] sm:$0xff]
    %v23 = vld [vmem:[%s2 + $0x20] sm:$0xff]
    %v24 = vld [vmem:[%s2 + $0x28] sm:$0xff]
    %v25 = vld [vmem:[%s2 + $0x30] sm:$0xff]
    %v26 = vld [vmem:[%s2 + $0x38] sm:$0xff]
    %v27 = vmul.f32 %v19, %v19
    %v28 = vmul.f32 %v20, %v20
    %v29 = vmul.f32 %v21, %v21
    %v30 = vmul.f32 %v22, %v22
    %v31 = vmul.f32 %v23, %v23
    %v32 = vmul.f32 %v24, %v24
    %v33 = vmul.f32 %v25, %v25
    %v34 = vmul.f32 %v26, %v26
    %v35 = vlaneseq
    %v36 = vand.u32 %v35, 127
    %37 = vset.pattern.permute.xlu0 0
    %38 = vperm.xlu0 %37, %v17
    %v39 = vpop.permute.xlu0 %38
    %40 = vset.pattern.permute.xlu0 0
    %41 = vperm.xlu0 %40, %v18
    %v42 = vpop.permute.xlu0 %41
    %vm43 = vcmp.eq.s32.totalorder %v39, %v36
    %vm44 = vcmp.eq.s32.totalorder %v42, %v36
    %v45 = vsel %vm43, 1, 0
    %v46 = vsel %vm44, 1, 0
    %v47 = vcvt.s32.f32 %v45
    %v48 = vcvt.s32.f32 %v46
    %v49 = vadd.f32 %v47, 0.0
    %v50 = vadd.f32 %v48, 0.0
    %51 = vset.pattern.permute.xlu0 1
    %52 = vperm.xlu0 %51, %v17
    %v53 = vpop.permute.xlu0 %52
    %54 = vset.pattern.permute.xlu0 1
    %55 = vperm.xlu0 %54, %v18
    %v56 = vpop.permute.xlu0 %55
    %vm57 = vcmp.eq.s32.totalorder %v53, %v36
    %vm58 = vcmp.eq.s32.totalorder %v56, %v36
    %v59 = vsel %vm57, 1, 0
    %v60 = vsel %vm58, 1, 0
    %v61 = vcvt.s32.f32 %v59
    %v62 = vcvt.s32.f32 %v60
    %v63 = vadd.f32 %v49, %v61
    %v64 = vadd.f32 %v50, %v62
    %65 = vset.pattern.permute.xlu0 2
    %66 = vperm.xlu0 %65, %v17
    %v67 = vpop.permute.xlu0 %66
    %68 = vset.pattern.permute.xlu0 2
    %69 = vperm.xlu0 %68, %v18
    %v70 = vpop.permute.xlu0 %69
    %vm71 = vcmp.eq.s32.totalorder %v67, %v36
    %vm72 = vcmp.eq.s32.totalorder %v70, %v36
    %v73 = vsel %vm71, 1, 0
    %v74 = vsel %vm72, 1, 0
    %v75 = vcvt.s32.f32 %v73
    %v76 = vcvt.s32.f32 %v74
    %v77 = vadd.f32 %v63, %v75
    %v78 = vadd.f32 %v64, %v76
    %79 = vset.pattern.permute.xlu0 3
    %80 = vperm.xlu0 %79, %v17
    %v81 = vpop.permute.xlu0 %80
    %82 = vset.pattern.permute.xlu0 3
    %83 = vperm.xlu0 %82, %v18
    %v84 = vpop.permute.xlu0 %83
    %vm85 = vcmp.eq.s32.totalorder %v81, %v36
    %vm86 = vcmp.eq.s32.totalorder %v84, %v36
    %v87 = vsel %vm85, 1, 0
    %v88 = vsel %vm86, 1, 0
    %v89 = vcvt.s32.f32 %v87
    %v90 = vcvt.s32.f32 %v88
    %v91 = vadd.f32 %v77, %v89
    %v92 = vadd.f32 %v78, %v90
    %93 = vset.pattern.permute.xlu0 4
    %94 = vperm.xlu0 %93, %v17
    %v95 = vpop.permute.xlu0 %94
    %96 = vset.pattern.permute.xlu0 4
    %97 = vperm.xlu0 %96, %v18
    %v98 = vpop.permute.xlu0 %97
    %vm99 = vcmp.eq.s32.totalorder %v95, %v36
    %vm100 = vcmp.eq.s32.totalorder %v98, %v36
    %v101 = vsel %vm99, 1, 0
    %v102 = vsel %vm100, 1, 0
    %v103 = vcvt.s32.f32 %v101
    %v104 = vcvt.s32.f32 %v102
    %v105 = vadd.f32 %v91, %v103
    %v106 = vadd.f32 %v92, %v104
    %107 = vset.pattern.permute.xlu0 5
    %108 = vperm.xlu0 %107, %v17
    %v109 = vpop.permute.xlu0 %108
    %110 = vset.pattern.permute.xlu0 5
    %111 = vperm.xlu0 %110, %v18
    %v112 = vpop.permute.xlu0 %111
    %vm113 = vcmp.eq.s32.totalorder %v109, %v36
    %vm114 = vcmp.eq.s32.totalorder %v112, %v36
    %v115 = vsel %vm113, 1, 0
    %v116 = vsel %vm114, 1, 0
    %v117 = vcvt.s32.f32 %v115
    %v118 = vcvt.s32.f32 %v116
    %v119 = vadd.f32 %v105, %v117
    %v120 = vadd.f32 %v106, %v118
    %vm121 = vcmask 523264
    %v123 = vsel %vm121, %v119, 0
    %v126 = vsel %vm121, %v120, 0
    %128 = vmatprep.subr.mxu0 0.0
    %129 = vmatpush1.msra.mxu0 0.0
    %130 = vmatprep.subr.mxu0 0.0
    %131 = vmatpush1.msra.mxu0 0.0
    %132 = vmatprep.subr.mxu0 0.0
    %133 = vmatpush1.msra.mxu0 0.0
    %134 = vmatprep.subr.mxu0 0.0
    %135 = vmatpush1.msra.mxu0 0.0
    %136 = vmatprep.subr.mxu0 0.0
    %137 = vmatpush1.msra.mxu0 0.0
    %138 = vmatprep.subr.mxu0 0.0
    %139 = vmatpush1.msra.mxu0 0.0
    %140 = vmatprep.subr.mxu0 0.0
    %141 = vmatpush1.msra.mxu0 0.0
    %142 = vmatprep.subr.mxu0 0.0
    %143 = vmatpush1.msra.mxu0 0.0
    %144 = vmatprep.subr.mxu0 0.0
    %145 = vmatpush1.msra.mxu0 %v26
    %146 = vmatprep.subr.mxu0 0.0
    %147 = vmatpush1.msra.mxu0 %v25
    %148 = vmatprep.subr.mxu0 0.0
    %149 = vmatpush1.msra.mxu0 %v24
    %150 = vmatprep.subr.mxu0 0.0
    %151 = vmatpush1.msra.mxu0 %v23
    %152 = vmatprep.subr.mxu0 0.0
    %153 = vmatpush1.msra.mxu0 %v22
    %154 = vmatprep.subr.mxu0 0.0
    %155 = vmatpush1.msra.mxu0 %v21
    %156 = vmatprep.subr.mxu0 0.0
    %157 = vmatpush1.msra.mxu0 %v20
    %158 = vmatprep.subr.mxu0 0.0
    %159 = vmatpush1.msra.mxu0 %v19
    %160 = vmatprep.subr.mxu0 0.0
    %161 = vmatpush2.msra.mxu0 0.0
    %162 = vmatprep.subr.mxu0 0.0
    %163 = vmatpush2.msra.mxu0 0.0
    %164 = vmatprep.subr.mxu0 0.0
    %165 = vmatpush2.msra.mxu0 0.0
    %166 = vmatprep.subr.mxu0 0.0
    %167 = vmatpush2.msra.mxu0 0.0
    %168 = vmatprep.subr.mxu0 0.0
    %169 = vmatpush2.msra.mxu0 0.0
    %170 = vmatprep.subr.mxu0 0.0
    %171 = vmatpush2.msra.mxu0 0.0
    %172 = vmatprep.subr.mxu0 0.0
    %173 = vmatpush2.msra.mxu0 0.0
    %174 = vmatprep.subr.mxu0 0.0
    %175 = vmatpush2.msra.mxu0 0.0
    %176 = vmatprep.subr.mxu0 0.0
    %177 = vmatpush2.msra.mxu0 0.0
    %178 = vmatprep.subr.mxu0 0.0
    %179 = vmatpush2.msra.mxu0 0.0
    %180 = vmatprep.subr.mxu0 0.0
    %181 = vmatpush2.msra.mxu0 0.0
    %182 = vmatprep.subr.mxu0 0.0
    %183 = vmatpush2.msra.mxu0 0.0
    %184 = vmatprep.subr.mxu0 0.0
    %185 = vmatpush2.msra.mxu0 0.0
    %186 = vmatprep.subr.mxu0 0.0
    %187 = vmatpush2.msra.mxu0 0.0
    %188 = vmatprep.subr.mxu0 0.0
    %189 = vmatpush2.msra.mxu0 0.0
    %190 = vmatprep.subr.mxu0 0.0
    %191 = vmatpush2.msra.mxu0 0.0
    %192 = vmatprep.mubr.f32.mxu0 0.0
    %193 = vmatmul.mubr.f32.gmra.mxu0 %v123
    %v194 = vpop.f32.mrf.mxu0
    %v195 = vadd.f32 0.0, %v194
    %v196 = vpop.f32.mrf.mxu0
    %197 = vmatprep.mubr.f32.mxu0 0.0
    %198 = vmatmul.mubr.f32.gmra.mxu0 %v126
    %v199 = vpop.f32.mrf.mxu0
    %v200 = vadd.f32 0.0, %v199
    %v201 = vpop.f32.mrf.mxu0
    %202 = vdwg.mxu0
    %vm203 = vcmask 31744
    %v205 = vsel %vm203, %v15, 0
    %v208 = vsel %vm203, %v16, 0
    %vm210 = vcmask 1043456
    %v212 = vsel %vm210, %v19, 0
    %214 = vmatprep.subr.mxu0 0.0
    %215 = vmatpush1.msra.mxu0 0.0
    %216 = vmatprep.subr.mxu0 0.0
    %217 = vmatpush1.msra.mxu0 0.0
    %218 = vmatprep.subr.mxu0 0.0
    %219 = vmatpush1.msra.mxu0 0.0
    %220 = vmatprep.subr.mxu0 0.0
    %221 = vmatpush1.msra.mxu0 0.0
    %222 = vmatprep.subr.mxu0 0.0
    %223 = vmatpush1.msra.mxu0 0.0
    %224 = vmatprep.subr.mxu0 0.0
    %225 = vmatpush1.msra.mxu0 0.0
    %226 = vmatprep.subr.mxu0 0.0
    %227 = vmatpush1.msra.mxu0 0.0
    %228 = vmatprep.subr.mxu0 0.0
    %229 = vmatpush1.msra.mxu0 0.0
    %230 = vmatprep.subr.mxu0 0.0
    %231 = vmatpush1.msra.mxu0 0.0
    %232 = vmatprep.subr.mxu0 0.0
    %233 = vmatpush1.msra.mxu0 0.0
    %234 = vmatprep.subr.mxu0 0.0
    %235 = vmatpush1.msra.mxu0 0.0
    %236 = vmatprep.subr.mxu0 0.0
    %237 = vmatpush1.msra.mxu0 0.0
    %238 = vmatprep.subr.mxu0 0.0
    %239 = vmatpush1.msra.mxu0 0.0
    %240 = vmatprep.subr.mxu0 0.0
    %241 = vmatpush1.msra.mxu0 0.0
    %242 = vmatprep.subr.mxu0 0.0
    %243 = vmatpush1.msra.mxu0 0.0
    %244 = vmatprep.subr.mxu0 0.0
    %245 = vmatpush1.msra.mxu0 %v212
    %246 = vmatprep.subr.mxu0 0.0
    %247 = vmatpush2.msra.mxu0 0.0
    %248 = vmatprep.subr.mxu0 0.0
    %249 = vmatpush2.msra.mxu0 0.0
    %250 = vmatprep.subr.mxu0 0.0
    %251 = vmatpush2.msra.mxu0 0.0
    %252 = vmatprep.subr.mxu0 0.0
    %253 = vmatpush2.msra.mxu0 0.0
    %254 = vmatprep.subr.mxu0 0.0
    %255 = vmatpush2.msra.mxu0 0.0
    %256 = vmatprep.subr.mxu0 0.0
    %257 = vmatpush2.msra.mxu0 0.0
    %258 = vmatprep.subr.mxu0 0.0
    %259 = vmatpush2.msra.mxu0 0.0
    %260 = vmatprep.subr.mxu0 0.0
    %261 = vmatpush2.msra.mxu0 0.0
    %262 = vmatprep.subr.mxu0 0.0
    %263 = vmatpush2.msra.mxu0 0.0
    %264 = vmatprep.subr.mxu0 0.0
    %265 = vmatpush2.msra.mxu0 0.0
    %266 = vmatprep.subr.mxu0 0.0
    %267 = vmatpush2.msra.mxu0 0.0
    %268 = vmatprep.subr.mxu0 0.0
    %269 = vmatpush2.msra.mxu0 0.0
    %270 = vmatprep.subr.mxu0 0.0
    %271 = vmatpush2.msra.mxu0 0.0
    %272 = vmatprep.subr.mxu0 0.0
    %273 = vmatpush2.msra.mxu0 0.0
    %274 = vmatprep.subr.mxu0 0.0
    %275 = vmatpush2.msra.mxu0 0.0
    %276 = vmatprep.subr.mxu0 0.0
    %277 = vmatpush2.msra.mxu0 0.0
    %278 = vmatprep.mubr.f32.mxu0 0.0
    %279 = vmatmul.mubr.f32.gmra.mxu0 %v205
    %v280 = vpop.f32.mrf.mxu0
    %v281 = vadd.f32 %v195, %v280
    %v282 = vpop.f32.mrf.mxu0
    %283 = vmatprep.mubr.f32.mxu0 0.0
    %284 = vmatmul.mubr.f32.gmra.mxu0 %v208
    %v285 = vpop.f32.mrf.mxu0
    %v286 = vadd.f32 %v200, %v285
    %v287 = vpop.f32.mrf.mxu0
    %288 = vdwg.mxu0
    %v289 = vmul.f32 %v15, %v15
    %v290 = vmul.f32 %v16, %v16
    %291 = vmatprep.subr.mxu0 0.0
    %292 = vmatpush1.msra.mxu0 0.0
    %293 = vmatprep.subr.mxu0 0.0
    %294 = vmatpush1.msra.mxu0 0.0
    %295 = vmatprep.subr.mxu0 0.0
    %296 = vmatpush1.msra.mxu0 0.0
    %297 = vmatprep.subr.mxu0 0.0
    %298 = vmatpush1.msra.mxu0 0.0
    %299 = vmatprep.subr.mxu0 0.0
    %300 = vmatpush1.msra.mxu0 0.0
    %301 = vmatprep.subr.mxu0 0.0
    %302 = vmatpush1.msra.mxu0 0.0
    %303 = vmatprep.subr.mxu0 0.0
    %304 = vmatpush1.msra.mxu0 0.0
    %305 = vmatprep.subr.mxu0 0.0
    %306 = vmatpush1.msra.mxu0 0.0
    %307 = vmatprep.subr.mxu0 0.0
    %308 = vmatpush1.msra.mxu0 %v34
    %309 = vmatprep.subr.mxu0 0.0
    %310 = vmatpush1.msra.mxu0 %v33
    %311 = vmatprep.subr.mxu0 0.0
    %312 = vmatpush1.msra.mxu0 %v32
    %313 = vmatprep.subr.mxu0 0.0
    %314 = vmatpush1.msra.mxu0 %v31
    %315 = vmatprep.subr.mxu0 0.0
    %316 = vmatpush1.msra.mxu0 %v30
    %317 = vmatprep.subr.mxu0 0.0
    %318 = vmatpush1.msra.mxu0 %v29
    %319 = vmatprep.subr.mxu0 0.0
    %320 = vmatpush1.msra.mxu0 %v28
    %321 = vmatprep.subr.mxu0 0.0
    %322 = vmatpush1.msra.mxu0 %v27
    %323 = vmatprep.subr.mxu0 0.0
    %324 = vmatpush2.msra.mxu0 0.0
    %325 = vmatprep.subr.mxu0 0.0
    %326 = vmatpush2.msra.mxu0 0.0
    %327 = vmatprep.subr.mxu0 0.0
    %328 = vmatpush2.msra.mxu0 0.0
    %329 = vmatprep.subr.mxu0 0.0
    %330 = vmatpush2.msra.mxu0 0.0
    %331 = vmatprep.subr.mxu0 0.0
    %332 = vmatpush2.msra.mxu0 0.0
    %333 = vmatprep.subr.mxu0 0.0
    %334 = vmatpush2.msra.mxu0 0.0
    %335 = vmatprep.subr.mxu0 0.0
    %336 = vmatpush2.msra.mxu0 0.0
    %337 = vmatprep.subr.mxu0 0.0
    %338 = vmatpush2.msra.mxu0 0.0
    %339 = vmatprep.subr.mxu0 0.0
    %340 = vmatpush2.msra.mxu0 0.0
    %341 = vmatprep.subr.mxu0 0.0
    %342 = vmatpush2.msra.mxu0 0.0
    %343 = vmatprep.subr.mxu0 0.0
    %344 = vmatpush2.msra.mxu0 0.0
    %345 = vmatprep.subr.mxu0 0.0
    %346 = vmatpush2.msra.mxu0 0.0
    %347 = vmatprep.subr.mxu0 0.0
    %348 = vmatpush2.msra.mxu0 0.0
    %349 = vmatprep.subr.mxu0 0.0
    %350 = vmatpush2.msra.mxu0 0.0
    %351 = vmatprep.subr.mxu0 0.0
    %352 = vmatpush2.msra.mxu0 0.0
    %353 = vmatprep.subr.mxu0 0.0
    %354 = vmatpush2.msra.mxu0 0.0
    %355 = vmatprep.mubr.f32.mxu0 0.0
    %356 = vmatmul.mubr.f32.gmra.mxu0 %v123
    %v357 = vpop.f32.mrf.mxu0
    %v358 = vadd.f32 0.0, %v357
    %v359 = vpop.f32.mrf.mxu0
    %360 = vmatprep.mubr.f32.mxu0 0.0
    %361 = vmatmul.mubr.f32.gmra.mxu0 %v126
    %v362 = vpop.f32.mrf.mxu0
    %v363 = vadd.f32 0.0, %v362
    %v364 = vpop.f32.mrf.mxu0
    %365 = vdwg.mxu0
    %v367 = vsel %vm203, %v289, 0
    %v370 = vsel %vm203, %v290, 0
    %v373 = vsel %vm210, %v27, 0
    %375 = vmatprep.subr.mxu0 0.0
    %376 = vmatpush1.msra.mxu0 0.0
    %377 = vmatprep.subr.mxu0 0.0
    %378 = vmatpush1.msra.mxu0 0.0
    %379 = vmatprep.subr.mxu0 0.0
    %380 = vmatpush1.msra.mxu0 0.0
    %381 = vmatprep.subr.mxu0 0.0
    %382 = vmatpush1.msra.mxu0 0.0
    %383 = vmatprep.subr.mxu0 0.0
    %384 = vmatpush1.msra.mxu0 0.0
    %385 = vmatprep.subr.mxu0 0.0
    %386 = vmatpush1.msra.mxu0 0.0
    %387 = vmatprep.subr.mxu0 0.0
    %388 = vmatpush1.msra.mxu0 0.0
    %389 = vmatprep.subr.mxu0 0.0
    %390 = vmatpush1.msra.mxu0 0.0
    %391 = vmatprep.subr.mxu0 0.0
    %392 = vmatpush1.msra.mxu0 0.0
    %393 = vmatprep.subr.mxu0 0.0
    %394 = vmatpush1.msra.mxu0 0.0
    %395 = vmatprep.subr.mxu0 0.0
    %396 = vmatpush1.msra.mxu0 0.0
    %397 = vmatprep.subr.mxu0 0.0
    %398 = vmatpush1.msra.mxu0 0.0
    %399 = vmatprep.subr.mxu0 0.0
    %400 = vmatpush1.msra.mxu0 0.0
    %401 = vmatprep.subr.mxu0 0.0
    %402 = vmatpush1.msra.mxu0 0.0
    %403 = vmatprep.subr.mxu0 0.0
    %404 = vmatpush1.msra.mxu0 0.0
    %405 = vmatprep.subr.mxu0 0.0
    %406 = vmatpush1.msra.mxu0 %v373
    %407 = vmatprep.subr.mxu0 0.0
    %408 = vmatpush2.msra.mxu0 0.0
    %409 = vmatprep.subr.mxu0 0.0
    %410 = vmatpush2.msra.mxu0 0.0
    %411 = vmatprep.subr.mxu0 0.0
    %412 = vmatpush2.msra.mxu0 0.0
    %413 = vmatprep.subr.mxu0 0.0
    %414 = vmatpush2.msra.mxu0 0.0
    %415 = vmatprep.subr.mxu0 0.0
    %416 = vmatpush2.msra.mxu0 0.0
    %417 = vmatprep.subr.mxu0 0.0
    %418 = vmatpush2.msra.mxu0 0.0
    %419 = vmatprep.subr.mxu0 0.0
    %420 = vmatpush2.msra.mxu0 0.0
    %421 = vmatprep.subr.mxu0 0.0
    %422 = vmatpush2.msra.mxu0 0.0
    %423 = vmatprep.subr.mxu0 0.0
    %424 = vmatpush2.msra.mxu0 0.0
    %425 = vmatprep.subr.mxu0 0.0
    %426 = vmatpush2.msra.mxu0 0.0
    %427 = vmatprep.subr.mxu0 0.0
    %428 = vmatpush2.msra.mxu0 0.0
    %429 = vmatprep.subr.mxu0 0.0
    %430 = vmatpush2.msra.mxu0 0.0
    %431 = vmatprep.subr.mxu0 0.0
    %432 = vmatpush2.msra.mxu0 0.0
    %433 = vmatprep.subr.mxu0 0.0
    %434 = vmatpush2.msra.mxu0 0.0
    %435 = vmatprep.subr.mxu0 0.0
    %436 = vmatpush2.msra.mxu0 0.0
    %437 = vmatprep.subr.mxu0 0.0
    %438 = vmatpush2.msra.mxu0 0.0
    %439 = vmatprep.mubr.f32.mxu0 0.0
    %440 = vmatmul.mubr.f32.gmra.mxu0 %v367
    %v441 = vpop.f32.mrf.mxu0
    %v442 = vadd.f32 %v358, %v441
    %v443 = vpop.f32.mrf.mxu0
    %444 = vmatprep.mubr.f32.mxu0 0.0
    %445 = vmatmul.mubr.f32.gmra.mxu0 %v370
    %v446 = vpop.f32.mrf.mxu0
    %v447 = vadd.f32 %v363, %v446
    %v448 = vpop.f32.mrf.mxu0
    %449 = vdwg.mxu0
    %v450 = vmul.f32 %v281, %v281
    %v451 = vmul.f32 %v286, %v286
    %vm452 = vcmask 326656
    %v453 = vsel %vm452, %v450, 0.0
    %454 = vadd.xlane.f32.xlu0 %v453
    %v455 = vpop.xlane.xlu0 %454
    %v456 = vsel %vm452, %v451, 0.0
    %457 = vadd.xlane.f32.xlu0 %v456
    %v458 = vpop.xlane.xlu0 %457
    %v459 = vsel %vm452, %v442, 0.0
    %460 = vadd.xlane.f32.xlu0 %v459
    %v461 = vpop.xlane.xlu0 %460
    %v462 = vsel %vm452, %v447, 0.0
    %463 = vadd.xlane.f32.xlu0 %v462
    %v464 = vpop.xlane.xlu0 %463
    %v465 = vsub.f32 %v455, %v461
    %v466 = vsub.f32 %v458, %v464
    %v467 = vmul.f32 %v465, 0.5
    %v468 = vmul.f32 %v466, 0.5
    %v469 = vxor.u32 %v467, 2147483648
    %v470 = vxor.u32 %v468, 2147483648
    %v471 = vmul.f32 %v469, 1.442695
    %v472 = vpow.pop %v471
    %v473 = vmul.f32 %v470, 1.442695
    %v474 = vpow.pop %v473
    %v475 = vadd.f32 %v472, 1.0
    %v476 = vadd.f32 %v474, 1.0
    %v477 = vrcp.pop %v475
    %v478 = vmul.f32 1.0, %v477
    %v479 = vrcp.pop %v476
    %v480 = vmul.f32 1.0, %v479
    %v483 = vlaneseq
    %v484 = vshrl.u32 %v483, 7
    %v485 = vsub.s32 %v36, %v484
    %v486 = vrot.slane %v478, %v485
    %v487 = vadd.s32 %v36, 4294967288
    %v488 = vlaneseq
    %v489 = vshrl.u32 %v488, 7
    %v490 = vsub.s32 %v487, %v489
    %v491 = vrot.slane %v480, %v490
    %vm492 = vcmask 130112
    %v493 = vsel %vm492, %v491, %v486
    %vm495 = vcmask 122880
    %496 = vst.msk [vmem:[#allocation2] sm:$0x1] %vm495, %v493
    // Predicated region
    $region14: #{tpu_custom_call.1} parent=1 // pred_check
      _
    $region15: #{tpu_custom_call.1} parent=1 // pred_check_branch
      %498 = sbr.rel (0) target = $region17
    $region16: #{tpu_custom_call.1} parent=1 // pred_region
      %s500 = ssub.s32 16, 16
      %501 = vsyncadd [#allocation3], %s500
      %s503 = sshll.u32 [#allocation2], 4
      %s504 = int_to_ptr.vmem [resolvable:$true] %s503
      %506 = dma.vmem_to_hbm [thread:$0]  %s504, 16, %s3, [#allocation3]
    $region17: #{tpu_custom_call.1} parent=1 // pred_fallthru
      _
    // Predicated region
    $region18: #{tpu_custom_call.1} parent=1 // pred_check
      _
    $region19: #{tpu_custom_call.1} parent=1 // pred_check_branch
      %508 = sbr.rel (0) target = $region21
    $region20: #{tpu_custom_call.1} parent=1 // pred_region
      %509 = dma.done [#allocation3], 16
    $region21: #{tpu_custom_call.1} parent=1 // pred_fallthru
      _
    %510 = vsyncpa [#allocation3], 1

</llo_original>
